<compile_context>
chip_gen: v7x
topology: tpu7x:2x2x1
jax: 0.10.0
libtpu: 0.0.40
codegen_flags: <defaults>
</compile_context>

<pallas_src>
from functools import partial

import jax
import jax.numpy as jnp
import numpy as np
from jax.experimental import pallas as pl
from jax.experimental.pallas import tpu as pltpu

# ----------------------------- model config ---------------------------------
DIM_IN = 2        # e.g. (x, y) coordinates
DIM_OUT = 3       # e.g. (u, v, p)
N_LAYER = 2       # hidden->hidden layers (total linear layers = N_LAYER + 2)
N_NODE = 32       # hidden width
UB = np.array([1.0, 2.0], dtype=np.float32)
LB = np.array([0.0, 0.0], dtype=np.float32)


# --------------------------- hardware detection ------------------------------
def _tpu_config():
    """Pick the lane-packing width and core count for this TPU generation."""
    pad, two_cores = 128, False            # safe default (128x128 MXU, 1 TC)
    try:
        kind = jax.devices()[0].device_kind.lower()
        if ("v6" in kind) or ("v7" in kind) or ("7x" in kind):
            pad = 256                      # 256x256 MXU on v6e / v7x
        if ("v7" in kind) or ("7x" in kind):
            two_cores = True               # v7x: 2 TensorCores / chip
    except Exception:
        pass
    return pad, two_cores


# ------------------------------- kernel -------------------------------------
def make_dnn_kernel(n_linear):
    """Kernel for an MLP with `n_linear` linear layers, all lane-packed."""

    def kernel(*refs):
        x_ref = refs[0]
        o_ref = refs[-1]
        wb_refs = refs[1:-1]

        # x_ref: (TM, P*DIM_IN) -- P independent batch sub-tiles packed along
        # lanes.  Normalization already folded into layer-0 weights.
        h = x_ref[...]
        for li in range(n_linear):
            w = wb_refs[2 * li][...]
            b = wb_refs[2 * li + 1][...]
            h = jnp.dot(h, w, preferred_element_type=jnp.float32) + b
            if li < n_linear - 1:
                h = jnp.tanh(h)
        o_ref[...] = h          # (TM, P*DIM_OUT): only useful lanes are stored

    return kernel


# --------------------- host-side (once-per-param) packing --------------------
def _pack_block_diag(w, b, rows_blk, cols_blk, p):
    """P copies of `w` on the diagonal; bias tiled into matching lane groups."""
    w = np.asarray(w, np.float32)
    b = np.asarray(b, np.float32)
    wp = np.zeros((p * rows_blk, p * cols_blk), np.float32)
    bp = np.zeros((1, p * cols_blk), np.float32)
    for g in range(p):
        wp[g * rows_blk:(g + 1) * rows_blk, g * cols_blk:(g + 1) * cols_blk] = w
        bp[0, g * cols_blk:(g + 1) * cols_blk] = b
    return wp, bp


def pack_params(params, lb, ub, pad, dim_in, dim_out, n_node):
    """Fold (x-lb)/(ub-lb) into layer 0 and block-diagonally lane-pack all
    weights/biases.  Run ONCE per parameter update (outside the hot path)."""
    assert pad % n_node == 0
    p = pad // n_node

    lb = np.asarray(lb, np.float32)
    ub = np.asarray(ub, np.float32)
    w0 = np.asarray(params[0][0], np.float32)
    b0 = np.asarray(params[0][1], np.float32)
    scale = 1.0 / (ub - lb)
    w0n = w0 * scale[:, None]
    b0n = b0 - (lb * scale) @ w0

    packed = [_pack_block_diag(w0n, b0n, dim_in, n_node, p)]
    for (w, b) in params[1:-1]:
        packed.append(_pack_block_diag(w, b, n_node, n_node, p))
    wl, bl = params[-1]
    # Final layer is packed lane-exact: (pad, p*dim_out) -> narrow output write.
    packed.append(_pack_block_diag(wl, bl, n_node, dim_out, p))

    flat = []
    for wp, bp in packed:
        flat += [jnp.asarray(wp), jnp.asarray(bp)]
    return tuple(flat)


# ------------------------------ tiling policy --------------------------------
def _pick_tm(nq, two_cores):
    """Rows per grid step over the packed (nq, P*DIM_IN) input."""
    max_tm = 2048
    if nq > max_tm:
        return max_tm                         # large batch: full tiles
    if two_cores and nq > 256:
        # 2-TC chips (v7x): split into >=2 grid steps so both cores get work.
        return max(128, 8 * (-(-nq // 16)))
    # 1-TC chips (v5e/v6e) or tiny batches: one grid step, no extra pipeline
    # step overhead.
    return max(8, 8 * (-(-nq // 8)))


# ------------------------------ jitted forward -------------------------------
@partial(jax.jit, static_argnames=("n_pack", "dim_in", "dim_out", "two_cores"))
def dnn_forward(x, packed_wb, *, n_pack, dim_in, dim_out, two_cores):
    """x: (N, dim_in) float32.  packed_wb: output of pack_params.
    Returns (N, dim_out) float32."""
    N = x.shape[0]
    P = n_pack
    n_linear = len(packed_wb) // 2

    nq_raw = -(-N // P)                     # packed rows needed
    tm = _pick_tm(nq_raw, two_cores)
    nq = -(-nq_raw // tm) * tm              # packed rows, padded to tile multiple
    n_pad = nq * P

    # Interleaved packing: packed row r, lane group g <-> original row r*P + g.
    # Row-major reshape => no transpose, no data movement beyond the row pad.
    x_p = jnp.pad(x.astype(jnp.float32), ((0, n_pad - N), (0, 0)))
    x_packed = x_p.reshape(nq, P * dim_in)

    out_w = P * dim_out
    grid = (nq // tm,)

    in_specs = [pl.BlockSpec((tm, P * dim_in), lambda i: (i, 0))]
    for arr in packed_wb:
        # Grid-invariant weights/biases: constant block index, full-array block.
        in_specs.append(pl.BlockSpec(arr.shape, lambda i: (0, 0)))
    out_spec = pl.BlockSpec((tm, out_w), lambda i: (i, 0))

    # Advisory cost estimate so XLA schedules this call well in a larger graph.
    flops = 2 * nq * sum(w.shape[0] * w.shape[1] for w in packed_wb[0::2])
    transc = nq * sum(w.shape[1] for w in packed_wb[0::2][:-1])
    bytes_acc = 4 * (nq * P * dim_in + nq * out_w
                     + sum(int(a.size) for a in packed_wb))

    y_packed = pl.pallas_call(
        make_dnn_kernel(n_linear),
        out_shape=jax.ShapeDtypeStruct((nq, out_w), jnp.float32),
        grid_spec=pltpu.PrefetchScalarGridSpec(
            num_scalar_prefetch=0,
            grid=grid,
            in_specs=in_specs,
            out_specs=out_spec,
        ),
        compiler_params=pltpu.CompilerParams(
            dimension_semantics=("parallel",)),
        cost_estimate=pl.CostEstimate(
            flops=flops, transcendentals=transc, bytes_accessed=bytes_acc),
    )(x_packed, *packed_wb)

    # Unpack is a free reshape (interleaved packing), then drop padded rows.
    y = y_packed.reshape(n_pad, dim_out)
    return y[:N]


# -------------------------- parameter construction ---------------------------
def xavier_uniform(key, fan_in, fan_out):
    # torch.nn.init.xavier_uniform_ with gain=1; stored (in, out) so y = x @ W.
    bound = float(np.sqrt(6.0 / (fan_in + fan_out)))
    return jax.random.uniform(key, (fan_in, fan_out), jnp.float32,
                              minval=-bound, maxval=bound)


def make_params(key):
    dims = [DIM_IN] + [N_NODE] * (N_LAYER + 1) + [DIM_OUT]
    params = []
    for n_in, n_out in zip(dims[:-1], dims[1:]):
        key, sub = jax.random.split(key)
        w = xavier_uniform(sub, n_in, n_out)
        b = jnp.zeros((n_out,), jnp.float32)
        params.append((w, b))
    return params


def reference_forward(x, params, lb, ub):
    h = (x - lb[None, :]) / (ub[None, :] - lb[None, :])
    n = len(params)
    for i, (w, b) in enumerate(params):
        h = h @ w + b[None, :]
        if i < n - 1:
            h = jnp.tanh(h)
    return h


# --------------------------------- main --------------------------------------
if __name__ == "__main__":
    pad, two_cores = _tpu_config()

    key = jax.random.PRNGKey(0)
    key, kx = jax.random.split(key)

    N = 1000   # deliberately not a multiple of any tile size (exercises padding)
    lb = jnp.asarray(LB)
    ub = jnp.asarray(UB)
    x = jax.random.uniform(kx, (N, DIM_IN), jnp.float32, minval=lb, maxval=ub)

    params = make_params(key)

    # One-time (per parameter update) host-side packing — out of the hot path.
    packed_wb = pack_params(params, LB, UB, pad, DIM_IN, DIM_OUT, N_NODE)

    y = dnn_forward(x, packed_wb,
                    n_pack=pad // N_NODE, dim_in=DIM_IN, dim_out=DIM_OUT,
                    two_cores=two_cores)
    y = jax.block_until_ready(y)

    y_ref = reference_forward(x, params, lb, ub)
    assert y.shape == (N, DIM_OUT)
    np.testing.assert_allclose(np.asarray(y), np.asarray(y_ref),
                               rtol=1e-5, atol=1e-5)

    print("KERNEL_OK")
</pallas_src>

<mosaic_0001>
module attributes {stable_mosaic.version = 11 : i64} {
  func.func @kernel(%arg0: i32, %arg1: memref<256x8xf32, #tpu.memory_space<vmem>>, %arg2: memref<8x128xf32, #tpu.memory_space<vmem>>, %arg3: memref<1x128xf32, #tpu.memory_space<vmem>>, %arg4: memref<128x128xf32, #tpu.memory_space<vmem>>, %arg5: memref<1x128xf32, #tpu.memory_space<vmem>>, %arg6: memref<128x128xf32, #tpu.memory_space<vmem>>, %arg7: memref<1x128xf32, #tpu.memory_space<vmem>>, %arg8: memref<128x12xf32, #tpu.memory_space<vmem>>, %arg9: memref<1x12xf32, #tpu.memory_space<vmem>>, %arg10: memref<256x12xf32, #tpu.memory_space<vmem>>) attributes {dimension_semantics = [#tpu.dimension_semantics<parallel>], iteration_bounds = array<i64: 1>, scalar_prefetch = 0 : i64, scratch_operands = 0 : i64, tpu.core_type = #tpu.core_type<tc>, window_params = [{transform_indices = @transform_0, window_bounds = array<i64: 256, 8>}, {pipeline_mode = #tpu.pipeline_mode<synchronous>, transform_indices = @transform_1, window_bounds = array<i64: 8, 128>}, {pipeline_mode = #tpu.pipeline_mode<synchronous>, transform_indices = @transform_2, window_bounds = array<i64: 1, 128>}, {pipeline_mode = #tpu.pipeline_mode<synchronous>, transform_indices = @transform_3, window_bounds = array<i64: 128, 128>}, {pipeline_mode = #tpu.pipeline_mode<synchronous>, transform_indices = @transform_4, window_bounds = array<i64: 1, 128>}, {pipeline_mode = #tpu.pipeline_mode<synchronous>, transform_indices = @transform_5, window_bounds = array<i64: 128, 128>}, {pipeline_mode = #tpu.pipeline_mode<synchronous>, transform_indices = @transform_6, window_bounds = array<i64: 1, 128>}, {pipeline_mode = #tpu.pipeline_mode<synchronous>, transform_indices = @transform_7, window_bounds = array<i64: 128, 12>}, {pipeline_mode = #tpu.pipeline_mode<synchronous>, transform_indices = @transform_8, window_bounds = array<i64: 1, 12>}, {transform_indices = @transform_9, window_bounds = array<i64: 256, 12>}]} {
    %c0 = arith.constant 0 : index
    %c0_0 = arith.constant 0 : index
    %0 = vector.load %arg1[%c0, %c0_0] : memref<256x8xf32, #tpu.memory_space<vmem>>, vector<256x8xf32>
    %c0_1 = arith.constant 0 : index
    %c0_2 = arith.constant 0 : index
    %1 = vector.load %arg2[%c0_1, %c0_2] : memref<8x128xf32, #tpu.memory_space<vmem>>, vector<8x128xf32>
    %c0_3 = arith.constant 0 : index
    %c0_4 = arith.constant 0 : index
    %2 = vector.load %arg3[%c0_3, %c0_4] : memref<1x128xf32, #tpu.memory_space<vmem>>, vector<1x128xf32>
    %cst = arith.constant dense<0.000000e+00> : vector<256x128xf32>
    %3 = tpu.matmul %0, %1, %cst {dimension_numbers = #tpu.dot_dimension_numbers<[1], [0], [0], [1], [0, 0, 1, 1], [], []>} : vector<256x8xf32>, vector<8x128xf32>, vector<256x128xf32> -> vector<256x128xf32>
    %4 = vector.broadcast %2 : vector<1x128xf32> to vector<256x128xf32>
    %5 = arith.addf %3, %4 : vector<256x128xf32>
    %6 = math.tanh %5 : vector<256x128xf32>
    %c0_5 = arith.constant 0 : index
    %c0_6 = arith.constant 0 : index
    %7 = vector.load %arg4[%c0_5, %c0_6] : memref<128x128xf32, #tpu.memory_space<vmem>>, vector<128x128xf32>
    %c0_7 = arith.constant 0 : index
    %c0_8 = arith.constant 0 : index
    %8 = vector.load %arg5[%c0_7, %c0_8] : memref<1x128xf32, #tpu.memory_space<vmem>>, vector<1x128xf32>
    %cst_9 = arith.constant dense<0.000000e+00> : vector<256x128xf32>
    %9 = tpu.matmul %6, %7, %cst_9 {dimension_numbers = #tpu.dot_dimension_numbers<[1], [0], [0], [1], [0, 0, 1, 1], [], []>} : vector<256x128xf32>, vector<128x128xf32>, vector<256x128xf32> -> vector<256x128xf32>
    %10 = vector.broadcast %8 : vector<1x128xf32> to vector<256x128xf32>
    %11 = arith.addf %9, %10 : vector<256x128xf32>
    %12 = math.tanh %11 : vector<256x128xf32>
    %c0_10 = arith.constant 0 : index
    %c0_11 = arith.constant 0 : index
    %13 = vector.load %arg6[%c0_10, %c0_11] : memref<128x128xf32, #tpu.memory_space<vmem>>, vector<128x128xf32>
    %c0_12 = arith.constant 0 : index
    %c0_13 = arith.constant 0 : index
    %14 = vector.load %arg7[%c0_12, %c0_13] : memref<1x128xf32, #tpu.memory_space<vmem>>, vector<1x128xf32>
    %cst_14 = arith.constant dense<0.000000e+00> : vector<256x128xf32>
    %15 = tpu.matmul %12, %13, %cst_14 {dimension_numbers = #tpu.dot_dimension_numbers<[1], [0], [0], [1], [0, 0, 1, 1], [], []>} : vector<256x128xf32>, vector<128x128xf32>, vector<256x128xf32> -> vector<256x128xf32>
    %16 = vector.broadcast %14 : vector<1x128xf32> to vector<256x128xf32>
    %17 = arith.addf %15, %16 : vector<256x128xf32>
    %18 = math.tanh %17 : vector<256x128xf32>
    %c0_15 = arith.constant 0 : index
    %c0_16 = arith.constant 0 : index
    %19 = vector.load %arg8[%c0_15, %c0_16] : memref<128x12xf32, #tpu.memory_space<vmem>>, vector<128x12xf32>
    %c0_17 = arith.constant 0 : index
    %c0_18 = arith.constant 0 : index
    %20 = vector.load %arg9[%c0_17, %c0_18] : memref<1x12xf32, #tpu.memory_space<vmem>>, vector<1x12xf32>
    %cst_19 = arith.constant dense<0.000000e+00> : vector<256x12xf32>
    %21 = tpu.matmul %18, %19, %cst_19 {dimension_numbers = #tpu.dot_dimension_numbers<[1], [0], [0], [1], [0, 0, 1, 1], [], []>} : vector<256x128xf32>, vector<128x12xf32>, vector<256x12xf32> -> vector<256x12xf32>
    %22 = vector.broadcast %20 : vector<1x12xf32> to vector<256x12xf32>
    %23 = arith.addf %21, %22 : vector<256x12xf32>
    %c0_20 = arith.constant 0 : index
    %c0_21 = arith.constant 0 : index
    %24 = vector.load %arg10[%c0_20, %c0_21] : memref<256x12xf32, #tpu.memory_space<vmem>>, vector<256x12xf32>
    tpu.vector_store %arg10[%c0_20, %c0_21], %23 {strides = array<i32>} : memref<256x12xf32, #tpu.memory_space<vmem>>, vector<256x12xf32>,
    return
  }
  func.func @transform_0(%arg0: i32) -> (i32, i32) {
    %c0_i32 = arith.constant 0 : i32
    %c0_i32_0 = arith.constant 0 : i32
    return %arg0, %c0_i32 : i32, i32
  }
  func.func @transform_1(%arg0: i32) -> (i32, i32) {
    %c0_i32 = arith.constant 0 : i32
    %c0_i32_0 = arith.constant 0 : i32
    %c0_i32_1 = arith.constant 0 : i32
    return %c0_i32, %c0_i32_0 : i32, i32
  }
  func.func @transform_2(%arg0: i32) -> (i32, i32) {
    %c0_i32 = arith.constant 0 : i32
    %c0_i32_0 = arith.constant 0 : i32
    %c0_i32_1 = arith.constant 0 : i32
    return %c0_i32, %c0_i32_0 : i32, i32
  }
  func.func @transform_3(%arg0: i32) -> (i32, i32) {
    %c0_i32 = arith.constant 0 : i32
    %c0_i32_0 = arith.constant 0 : i32
    %c0_i32_1 = arith.constant 0 : i32
    return %c0_i32, %c0_i32_0 : i32, i32
  }
  func.func @transform_4(%arg0: i32) -> (i32, i32) {
    %c0_i32 = arith.constant 0 : i32
    %c0_i32_0 = arith.constant 0 : i32
    %c0_i32_1 = arith.constant 0 : i32
    return %c0_i32, %c0_i32_0 : i32, i32
  }
  func.func @transform_5(%arg0: i32) -> (i32, i32) {
    %c0_i32 = arith.constant 0 : i32
    %c0_i32_0 = arith.constant 0 : i32
    %c0_i32_1 = arith.constant 0 : i32
    return %c0_i32, %c0_i32_0 : i32, i32
  }
  func.func @transform_6(%arg0: i32) -> (i32, i32) {
    %c0_i32 = arith.constant 0 : i32
    %c0_i32_0 = arith.constant 0 : i32
    %c0_i32_1 = arith.constant 0 : i32
    return %c0_i32, %c0_i32_0 : i32, i32
  }
  func.func @transform_7(%arg0: i32) -> (i32, i32) {
    %c0_i32 = arith.constant 0 : i32
    %c0_i32_0 = arith.constant 0 : i32
    %c0_i32_1 = arith.constant 0 : i32
    return %c0_i32, %c0_i32_0 : i32, i32
  }
  func.func @transform_8(%arg0: i32) -> (i32, i32) {
    %c0_i32 = arith.constant 0 : i32
    %c0_i32_0 = arith.constant 0 : i32
    %c0_i32_1 = arith.constant 0 : i32
    return %c0_i32, %c0_i32_0 : i32, i32
  }
  func.func @transform_9(%arg0: i32) -> (i32, i32) {
    %c0_i32 = arith.constant 0 : i32
    %c0_i32_0 = arith.constant 0 : i32
    return %arg0, %c0_i32 : i32, i32
  }
}

</mosaic_0001>

<llo_original>
// kernel: dnn_forward.1
$region0: #{dnn_forward.1}
  #allocation0 [shape = 'u32[]', space=smem, size = 0x4, offset = 0x4, fixed_abs, tag = 'smem constant byte address 0x4 - core index']
  #allocation1 [shape = 'u32[144,128]{1,0:T(1,128)}', space=vmem, size = 0x12000, scoped, tag = 'internal scratch']
  %s0 = inlined_call_operand.vmem [shape: f32[256,8], index: 0, kind: input, shape index: {}]
  %s1 = inlined_call_operand.vmem [shape: f32[8,128], index: 1, kind: input, shape index: {}]
  %s2 = inlined_call_operand.vmem [shape: f32[1,128], index: 2, kind: input, shape index: {}]
  %s3 = inlined_call_operand.vmem [shape: f32[128,128], index: 3, kind: input, shape index: {}]
  %s4 = inlined_call_operand.vmem [shape: f32[1,128], index: 4, kind: input, shape index: {}]
  %s5 = inlined_call_operand.vmem [shape: f32[128,128], index: 5, kind: input, shape index: {}]
  %s6 = inlined_call_operand.vmem [shape: f32[1,128], index: 6, kind: input, shape index: {}]
  %s7 = inlined_call_operand.vmem [shape: f32[128,12], index: 7, kind: input, shape index: {}]
  %s8 = inlined_call_operand.vmem [shape: f32[1,12], index: 8, kind: input, shape index: {}]
  %s9 = inlined_call_operand.vmem [shape: f32[256,12], index: 9, kind: output, shape index: {}]
  %s10 = sld [smem:[#allocation0]]
  $region46: #{dnn_forward.1} parent=0
    _
  %s12 = ssub.s32 1, %s10
  %s13 = scalar_select 0, %s12, %s10
  // Predicated region
  $region2: #{dnn_forward.1} parent=0 // pred_check
    _
  $region3: #{dnn_forward.1} parent=0 // pred_check_branch
    %15 = sbr.rel (0) target = $region5
  $region4: #{dnn_forward.1} parent=0 // pred_region
    _
  $region5: #{dnn_forward.1} parent=0 // pred_fallthru
    _
  // Predicated region
  $region6: #{dnn_forward.1} parent=0 // pred_check
    _
  $region7: #{dnn_forward.1} parent=0 // pred_check_branch
    %17 = sbr.rel (0) target = $region9
  $region8: #{dnn_forward.1} parent=0 // pred_region
    _
  $region9: #{dnn_forward.1} parent=0 // pred_fallthru
    _
  // Predicated region
  $region10: #{dnn_forward.1} parent=0 // pred_check
    _
  $region11: #{dnn_forward.1} parent=0 // pred_check_branch
    %19 = sbr.rel (0) target = $region13
  $region12: #{dnn_forward.1} parent=0 // pred_region
    _
  $region13: #{dnn_forward.1} parent=0 // pred_fallthru
    _
  // Predicated region
  $region14: #{dnn_forward.1} parent=0 // pred_check
    _
  $region15: #{dnn_forward.1} parent=0 // pred_check_branch
    %21 = sbr.rel (0) target = $region17
  $region16: #{dnn_forward.1} parent=0 // pred_region
    _
  $region17: #{dnn_forward.1} parent=0 // pred_fallthru
    _
  // Predicated region
  $region18: #{dnn_forward.1} parent=0 // pred_check
    _
  $region19: #{dnn_forward.1} parent=0 // pred_check_branch
    %23 = sbr.rel (0) target = $region21
  $region20: #{dnn_forward.1} parent=0 // pred_region
    _
  $region21: #{dnn_forward.1} parent=0 // pred_fallthru
    _
  // Predicated region
  $region22: #{dnn_forward.1} parent=0 // pred_check
    _
  $region23: #{dnn_forward.1} parent=0 // pred_check_branch
    %25 = sbr.rel (0) target = $region25
  $region24: #{dnn_forward.1} parent=0 // pred_region
    _
  $region25: #{dnn_forward.1} parent=0 // pred_fallthru
    _
  // Predicated region
  $region26: #{dnn_forward.1} parent=0 // pred_check
    _
  $region27: #{dnn_forward.1} parent=0 // pred_check_branch
    %27 = sbr.rel (0) target = $region29
  $region28: #{dnn_forward.1} parent=0 // pred_region
    _
  $region29: #{dnn_forward.1} parent=0 // pred_fallthru
    _
  // Predicated region
  $region30: #{dnn_forward.1} parent=0 // pred_check
    _
  $region31: #{dnn_forward.1} parent=0 // pred_check_branch
    %29 = sbr.rel (0) target = $region33
  $region32: #{dnn_forward.1} parent=0 // pred_region
    _
  $region33: #{dnn_forward.1} parent=0 // pred_fallthru
    _
  // Predicated region
  $region34: #{dnn_forward.1} parent=0 // pred_check
    _
  $region35: #{dnn_forward.1} parent=0 // pred_check_branch
    %31 = sbr.rel (0) target = $region37
  $region36: #{dnn_forward.1} parent=0 // pred_region
    _
  $region37: #{dnn_forward.1} parent=0 // pred_fallthru
    _
  %v32 = vld [vmem:[%s0] sm:$0xff]
  %v33 = vld [vmem:[%s0 + $0x8] sm:$0xff]
  %v34 = vld [vmem:[%s0 + $0x10] sm:$0xff]
  %v35 = vld [vmem:[%s0 + $0x18] sm:$0xff]
  %v36 = vld [vmem:[%s0 + $0x20] sm:$0xff]
  %v37 = vld [vmem:[%s0 + $0x28] sm:$0xff]
  %v38 = vld [vmem:[%s0 + $0x30] sm:$0xff]
  %v39 = vld [vmem:[%s0 + $0x38] sm:$0xff]
  %v40 = vld [vmem:[%s0 + $0x40] sm:$0xff]
  %v41 = vld [vmem:[%s0 + $0x48] sm:$0xff]
  %v42 = vld [vmem:[%s0 + $0x50] sm:$0xff]
  %v43 = vld [vmem:[%s0 + $0x58] sm:$0xff]
  %v44 = vld [vmem:[%s0 + $0x60] sm:$0xff]
  %v45 = vld [vmem:[%s0 + $0x68] sm:$0xff]
  %v46 = vld [vmem:[%s0 + $0x70] sm:$0xff]
  %v47 = vld [vmem:[%s0 + $0x78] sm:$0xff]
  %v48 = vld [vmem:[%s0 + $0x80] sm:$0xff]
  %v49 = vld [vmem:[%s0 + $0x88] sm:$0xff]
  %v50 = vld [vmem:[%s0 + $0x90] sm:$0xff]
  %v51 = vld [vmem:[%s0 + $0x98] sm:$0xff]
  %v52 = vld [vmem:[%s0 + $0xa0] sm:$0xff]
  %v53 = vld [vmem:[%s0 + $0xa8] sm:$0xff]
  %v54 = vld [vmem:[%s0 + $0xb0] sm:$0xff]
  %v55 = vld [vmem:[%s0 + $0xb8] sm:$0xff]
  %v56 = vld [vmem:[%s0 + $0xc0] sm:$0xff]
  %v57 = vld [vmem:[%s0 + $0xc8] sm:$0xff]
  %v58 = vld [vmem:[%s0 + $0xd0] sm:$0xff]
  %v59 = vld [vmem:[%s0 + $0xd8] sm:$0xff]
  %v60 = vld [vmem:[%s0 + $0xe0] sm:$0xff]
  %v61 = vld [vmem:[%s0 + $0xe8] sm:$0xff]
  %v62 = vld [vmem:[%s0 + $0xf0] sm:$0xff]
  %v63 = vld [vmem:[%s0 + $0xf8] sm:$0xff]
  %v64 = vld [vmem:[%s1] sm:$0xff]
  %v65 = vld [vmem:[%s2] sm:$0x1]
  %v67 = vlaneseq
  %v68 = vshrl.u32 %v67, 7
  %v69 = vsub.s32 0, %v68
  %v70 = vrot.slane %v65, %v69
  %vm72 = vcmask 64512
  %v74 = vsel %vm72, %v32, 0
  %v77 = vsel %vm72, %v33, 0
  %v80 = vsel %vm72, %v34, 0
  %v83 = vsel %vm72, %v35, 0
  %v86 = vsel %vm72, %v36, 0
  %v89 = vsel %vm72, %v37, 0
  %v92 = vsel %vm72, %v38, 0
  %v95 = vsel %vm72, %v39, 0
  %v98 = vsel %vm72, %v40, 0
  %v101 = vsel %vm72, %v41, 0
  %v104 = vsel %vm72, %v42, 0
  %v107 = vsel %vm72, %v43, 0
  %v110 = vsel %vm72, %v44, 0
  %v113 = vsel %vm72, %v45, 0
  %v116 = vsel %vm72, %v46, 0
  %v119 = vsel %vm72, %v47, 0
  %v122 = vsel %vm72, %v48, 0
  %v125 = vsel %vm72, %v49, 0
  %v128 = vsel %vm72, %v50, 0
  %v131 = vsel %vm72, %v51, 0
  %v134 = vsel %vm72, %v52, 0
  %v137 = vsel %vm72, %v53, 0
  %v140 = vsel %vm72, %v54, 0
  %v143 = vsel %vm72, %v55, 0
  %v146 = vsel %vm72, %v56, 0
  %v149 = vsel %vm72, %v57, 0
  %v152 = vsel %vm72, %v58, 0
  %v155 = vsel %vm72, %v59, 0
  %v158 = vsel %vm72, %v60, 0
  %v161 = vsel %vm72, %v61, 0
  %v164 = vsel %vm72, %v62, 0
  %v167 = vsel %vm72, %v63, 0
  %169 = vmatprep.subr.mxu0 0.0
  %170 = vmatpush1.msra.mxu0 %v64
  %171 = vmatprep.subr.mxu0 0.0
  %172 = vmatpush1.msra.mxu0 0.0
  %173 = vmatprep.subr.mxu0 0.0
  %174 = vmatpush1.msra.mxu0 0.0
  %175 = vmatprep.subr.mxu0 0.0
  %176 = vmatpush1.msra.mxu0 0.0
  %177 = vmatprep.subr.mxu0 0.0
  %178 = vmatpush1.msra.mxu0 0.0
  %179 = vmatprep.subr.mxu0 0.0
  %180 = vmatpush1.msra.mxu0 0.0
  %181 = vmatprep.subr.mxu0 0.0
  %182 = vmatpush1.msra.mxu0 0.0
  %183 = vmatprep.subr.mxu0 0.0
  %184 = vmatpush1.msra.mxu0 0.0
  %185 = vmatprep.subr.mxu0 0.0
  %186 = vmatpush1.msra.mxu0 0.0
  %187 = vmatprep.subr.mxu0 0.0
  %188 = vmatpush1.msra.mxu0 0.0
  %189 = vmatprep.subr.mxu0 0.0
  %190 = vmatpush1.msra.mxu0 0.0
  %191 = vmatprep.subr.mxu0 0.0
  %192 = vmatpush1.msra.mxu0 0.0
  %193 = vmatprep.subr.mxu0 0.0
  %194 = vmatpush1.msra.mxu0 0.0
  %195 = vmatprep.subr.mxu0 0.0
  %196 = vmatpush1.msra.mxu0 0.0
  %197 = vmatprep.subr.mxu0 0.0
  %198 = vmatpush1.msra.mxu0 0.0
  %199 = vmatprep.subr.mxu0 0.0
  %200 = vmatpush1.msra.mxu0 0.0
  %201 = vmatprep.subr.mxu0 0.0
  %202 = vmatpush1.msra.mxu0 0.0
  %203 = vmatprep.subr.mxu0 0.0
  %204 = vmatpush1.msra.mxu0 0.0
  %205 = vmatprep.subr.mxu0 0.0
  %206 = vmatpush1.msra.mxu0 0.0
  %207 = vmatprep.subr.mxu0 0.0
  %208 = vmatpush1.msra.mxu0 0.0
  %209 = vmatprep.subr.mxu0 0.0
  %210 = vmatpush1.msra.mxu0 0.0
  %211 = vmatprep.subr.mxu0 0.0
  %212 = vmatpush1.msra.mxu0 0.0
  %213 = vmatprep.subr.mxu0 0.0
  %214 = vmatpush1.msra.mxu0 0.0
  %215 = vmatprep.subr.mxu0 0.0
  %216 = vmatpush1.msra.mxu0 0.0
  %217 = vmatprep.subr.mxu0 0.0
  %218 = vmatpush1.msra.mxu0 0.0
  %219 = vmatprep.subr.mxu0 0.0
  %220 = vmatpush1.msra.mxu0 0.0
  %221 = vmatprep.subr.mxu0 0.0
  %222 = vmatpush1.msra.mxu0 0.0
  %223 = vmatprep.subr.mxu0 0.0
  %224 = vmatpush1.msra.mxu0 0.0
  %225 = vmatprep.subr.mxu0 0.0
  %226 = vmatpush1.msra.mxu0 0.0
  %227 = vmatprep.subr.mxu0 0.0
  %228 = vmatpush1.msra.mxu0 0.0
  %229 = vmatprep.subr.mxu0 0.0
  %230 = vmatpush1.msra.mxu0 0.0
  %231 = vmatprep.subr.mxu0 0.0
  %232 = vmatpush1.msra.mxu0 0.0
  %233 = vmatprep.mubr.f32.mxu0 0.0
  %234 = vmatmul.mubr.f32.gmra.mrb[0].mxu0 %v74
  %v235 = vpop.f32.mrb[0].mxu0
  %v236 = vadd.f32 %v70, %v235
  %v237 = vpop.f32.mrb[0].mxu0
  %238 = vmatprep.mubr.f32.mxu0 0.0
  %239 = vmatmul.mubr.f32.gmra.mrb[0].mxu0 %v77
  %v240 = vpop.f32.mrb[0].mxu0
  %v241 = vadd.f32 %v70, %v240
  %v242 = vpop.f32.mrb[0].mxu0
  %243 = vmatprep.mubr.f32.mxu0 0.0
  %244 = vmatmul.mubr.f32.gmra.mrb[0].mxu0 %v80
  %v245 = vpop.f32.mrb[0].mxu0
  %v246 = vadd.f32 %v70, %v245
  %v247 = vpop.f32.mrb[0].mxu0
  %248 = vmatprep.mubr.f32.mxu0 0.0
  %249 = vmatmul.mubr.f32.gmra.mrb[0].mxu0 %v83
  %v250 = vpop.f32.mrb[0].mxu0
  %v251 = vadd.f32 %v70, %v250
  %v252 = vpop.f32.mrb[0].mxu0
  %253 = vmatprep.mubr.f32.mxu0 0.0
  %254 = vmatmul.mubr.f32.gmra.mrb[0].mxu0 %v86
  %v255 = vpop.f32.mrb[0].mxu0
  %v256 = vadd.f32 %v70, %v255
  %v257 = vpop.f32.mrb[0].mxu0
  %258 = vmatprep.mubr.f32.mxu0 0.0
  %259 = vmatmul.mubr.f32.gmra.mrb[0].mxu0 %v89
  %v260 = vpop.f32.mrb[0].mxu0
  %v261 = vadd.f32 %v70, %v260
  %v262 = vpop.f32.mrb[0].mxu0
  %263 = vmatprep.mubr.f32.mxu0 0.0
  %264 = vmatmul.mubr.f32.gmra.mrb[0].mxu0 %v92
  %v265 = vpop.f32.mrb[0].mxu0
  %v266 = vadd.f32 %v70, %v265
  %v267 = vpop.f32.mrb[0].mxu0
  %268 = vmatprep.mubr.f32.mxu0 0.0
  %269 = vmatmul.mubr.f32.gmra.mrb[0].mxu0 %v95
  %v270 = vpop.f32.mrb[0].mxu0
  %v271 = vadd.f32 %v70, %v270
  %v272 = vpop.f32.mrb[0].mxu0
  %273 = vmatprep.mubr.f32.mxu0 0.0
  %274 = vmatmul.mubr.f32.gmra.mrb[0].mxu0 %v98
  %v275 = vpop.f32.mrb[0].mxu0
  %v276 = vadd.f32 %v70, %v275
  %v277 = vpop.f32.mrb[0].mxu0
  %278 = vmatprep.mubr.f32.mxu0 0.0
  %279 = vmatmul.mubr.f32.gmra.mrb[0].mxu0 %v101
  %v280 = vpop.f32.mrb[0].mxu0
  %v281 = vadd.f32 %v70, %v280
  %v282 = vpop.f32.mrb[0].mxu0
  %283 = vmatprep.mubr.f32.mxu0 0.0
  %284 = vmatmul.mubr.f32.gmra.mrb[0].mxu0 %v104
  %v285 = vpop.f32.mrb[0].mxu0
  %v286 = vadd.f32 %v70, %v285
  %v287 = vpop.f32.mrb[0].mxu0
  %288 = vmatprep.mubr.f32.mxu0 0.0
  %289 = vmatmul.mubr.f32.gmra.mrb[0].mxu0 %v107
  %v290 = vpop.f32.mrb[0].mxu0
  %v291 = vadd.f32 %v70, %v290
  %v292 = vpop.f32.mrb[0].mxu0
  %293 = vmatprep.mubr.f32.mxu0 0.0
  %294 = vmatmul.mubr.f32.gmra.mrb[0].mxu0 %v110
  %v295 = vpop.f32.mrb[0].mxu0
  %v296 = vadd.f32 %v70, %v295
  %v297 = vpop.f32.mrb[0].mxu0
  %298 = vmatprep.mubr.f32.mxu0 0.0
  %299 = vmatmul.mubr.f32.gmra.mrb[0].mxu0 %v113
  %v300 = vpop.f32.mrb[0].mxu0
  %v301 = vadd.f32 %v70, %v300
  %v302 = vpop.f32.mrb[0].mxu0
  %303 = vmatprep.mubr.f32.mxu0 0.0
  %304 = vmatmul.mubr.f32.gmra.mrb[0].mxu0 %v116
  %v305 = vpop.f32.mrb[0].mxu0
  %v306 = vadd.f32 %v70, %v305
  %v307 = vpop.f32.mrb[0].mxu0
  %308 = vmatprep.mubr.f32.mxu0 0.0
  %309 = vmatmul.mubr.f32.gmra.mrb[0].mxu0 %v119
  %v310 = vpop.f32.mrb[0].mxu0
  %v311 = vadd.f32 %v70, %v310
  %v312 = vpop.f32.mrb[0].mxu0
  %313 = vmatprep.mubr.f32.mxu0 0.0
  %314 = vmatmul.mubr.f32.gmra.mrb[0].mxu0 %v122
  %v315 = vpop.f32.mrb[0].mxu0
  %v316 = vadd.f32 %v70, %v315
  %v317 = vpop.f32.mrb[0].mxu0
  %318 = vmatprep.mubr.f32.mxu0 0.0
  %319 = vmatmul.mubr.f32.gmra.mrb[0].mxu0 %v125
  %v320 = vpop.f32.mrb[0].mxu0
  %v321 = vadd.f32 %v70, %v320
  %v322 = vpop.f32.mrb[0].mxu0
  %323 = vmatprep.mubr.f32.mxu0 0.0
  %324 = vmatmul.mubr.f32.gmra.mrb[0].mxu0 %v128
  %v325 = vpop.f32.mrb[0].mxu0
  %v326 = vadd.f32 %v70, %v325
  %v327 = vpop.f32.mrb[0].mxu0
  %328 = vmatprep.mubr.f32.mxu0 0.0
  %329 = vmatmul.mubr.f32.gmra.mrb[0].mxu0 %v131
  %v330 = vpop.f32.mrb[0].mxu0
  %v331 = vadd.f32 %v70, %v330
  %v332 = vpop.f32.mrb[0].mxu0
  %333 = vmatprep.mubr.f32.mxu0 0.0
  %334 = vmatmul.mubr.f32.gmra.mrb[0].mxu0 %v134
  %v335 = vpop.f32.mrb[0].mxu0
  %v336 = vadd.f32 %v70, %v335
  %v337 = vpop.f32.mrb[0].mxu0
  %338 = vmatprep.mubr.f32.mxu0 0.0
  %339 = vmatmul.mubr.f32.gmra.mrb[0].mxu0 %v137
  %v340 = vpop.f32.mrb[0].mxu0
  %v341 = vadd.f32 %v70, %v340
  %v342 = vpop.f32.mrb[0].mxu0
  %343 = vmatprep.mubr.f32.mxu0 0.0
  %344 = vmatmul.mubr.f32.gmra.mrb[0].mxu0 %v140
  %v345 = vpop.f32.mrb[0].mxu0
  %v346 = vadd.f32 %v70, %v345
  %v347 = vpop.f32.mrb[0].mxu0
  %348 = vmatprep.mubr.f32.mxu0 0.0
  %349 = vmatmul.mubr.f32.gmra.mrb[0].mxu0 %v143
  %v350 = vpop.f32.mrb[0].mxu0
  %v351 = vadd.f32 %v70, %v350
  %v352 = vpop.f32.mrb[0].mxu0
  %353 = vmatprep.mubr.f32.mxu0 0.0
  %354 = vmatmul.mubr.f32.gmra.mrb[0].mxu0 %v146
  %v355 = vpop.f32.mrb[0].mxu0
  %v356 = vadd.f32 %v70, %v355
  %v357 = vpop.f32.mrb[0].mxu0
  %358 = vmatprep.mubr.f32.mxu0 0.0
  %359 = vmatmul.mubr.f32.gmra.mrb[0].mxu0 %v149
  %v360 = vpop.f32.mrb[0].mxu0
  %v361 = vadd.f32 %v70, %v360
  %v362 = vpop.f32.mrb[0].mxu0
  %363 = vmatprep.mubr.f32.mxu0 0.0
  %364 = vmatmul.mubr.f32.gmra.mrb[0].mxu0 %v152
  %v365 = vpop.f32.mrb[0].mxu0
  %v366 = vadd.f32 %v70, %v365
  %v367 = vpop.f32.mrb[0].mxu0
  %368 = vmatprep.mubr.f32.mxu0 0.0
  %369 = vmatmul.mubr.f32.gmra.mrb[0].mxu0 %v155
  %v370 = vpop.f32.mrb[0].mxu0
  %v371 = vadd.f32 %v70, %v370
  %v372 = vpop.f32.mrb[0].mxu0
  %373 = vmatprep.mubr.f32.mxu0 0.0
  %374 = vmatmul.mubr.f32.gmra.mrb[0].mxu0 %v158
  %v375 = vpop.f32.mrb[0].mxu0
  %v376 = vadd.f32 %v70, %v375
  %v377 = vpop.f32.mrb[0].mxu0
  %378 = vmatprep.mubr.f32.mxu0 0.0
  %379 = vmatmul.mubr.f32.gmra.mrb[0].mxu0 %v161
  %v380 = vpop.f32.mrb[0].mxu0
  %v381 = vadd.f32 %v70, %v380
  %v382 = vpop.f32.mrb[0].mxu0
  %383 = vmatprep.mubr.f32.mxu0 0.0
  %384 = vmatmul.mubr.f32.gmra.mrb[0].mxu0 %v164
  %v385 = vpop.f32.mrb[0].mxu0
  %v386 = vadd.f32 %v70, %v385
  %v387 = vpop.f32.mrb[0].mxu0
  %388 = vmatprep.mubr.f32.mxu0 0.0
  %389 = vmatmul.mubr.f32.gmra.mrb[0].mxu0 %v167
  %v390 = vpop.f32.mrb[0].mxu0
  %v391 = vadd.f32 %v70, %v390
  %v392 = vpop.f32.mrb[0].mxu0
  %393 = vdwg.mxu0
  %v394 = vtanh.pop %v236
  %v395 = vtanh.pop %v241
  %v396 = vtanh.pop %v246
  %v397 = vtanh.pop %v251
  %v398 = vtanh.pop %v256
  %v399 = vtanh.pop %v261
  %v400 = vtanh.pop %v266
  %v401 = vtanh.pop %v271
  %v402 = vtanh.pop %v276
  %v403 = vtanh.pop %v281
  %v404 = vtanh.pop %v286
  %v405 = vtanh.pop %v291
  %v406 = vtanh.pop %v296
  %v407 = vtanh.pop %v301
  %v408 = vtanh.pop %v306
  %v409 = vtanh.pop %v311
  %v410 = vtanh.pop %v316
  %v411 = vtanh.pop %v321
  %v412 = vtanh.pop %v326
  %v413 = vtanh.pop %v331
  %v414 = vtanh.pop %v336
  %v415 = vtanh.pop %v341
  %v416 = vtanh.pop %v346
  %v417 = vtanh.pop %v351
  %v418 = vtanh.pop %v356
  %v419 = vtanh.pop %v361
  %v420 = vtanh.pop %v366
  %v421 = vtanh.pop %v371
  %v422 = vtanh.pop %v376
  %v423 = vtanh.pop %v381
  %v424 = vtanh.pop %v386
  %v425 = vtanh.pop %v391
  %v426 = vld [vmem:[%s3] sm:$0xff]
  %v427 = vld [vmem:[%s3 + $0x8] sm:$0xff]
  %v428 = vld [vmem:[%s3 + $0x10] sm:$0xff]
  %v429 = vld [vmem:[%s3 + $0x18] sm:$0xff]
  %v430 = vld [vmem:[%s3 + $0x20] sm:$0xff]
  %v431 = vld [vmem:[%s3 + $0x28] sm:$0xff]
  %v432 = vld [vmem:[%s3 + $0x30] sm:$0xff]
  %v433 = vld [vmem:[%s3 + $0x38] sm:$0xff]
  %v434 = vld [vmem:[%s3 + $0x40] sm:$0xff]
  %v435 = vld [vmem:[%s3 + $0x48] sm:$0xff]
  %v436 = vld [vmem:[%s3 + $0x50] sm:$0xff]
  %v437 = vld [vmem:[%s3 + $0x58] sm:$0xff]
  %v438 = vld [vmem:[%s3 + $0x60] sm:$0xff]
  %v439 = vld [vmem:[%s3 + $0x68] sm:$0xff]
  %v440 = vld [vmem:[%s3 + $0x70] sm:$0xff]
  %v441 = vld [vmem:[%s3 + $0x78] sm:$0xff]
  %v442 = vld [vmem:[%s4] sm:$0x1]
  %v444 = vlaneseq
  %v445 = vshrl.u32 %v444, 7
  %v446 = vsub.s32 0, %v445
  %v447 = vrot.slane %v442, %v446
  %449 = vmatprep.subr.mxu0 0.0
  %450 = vmatpush1.msra.mxu0 %v426
  %451 = vmatprep.subr.mxu0 0.0
  %452 = vmatpush1.msra.mxu0 %v427
  %453 = vmatprep.subr.mxu0 0.0
  %454 = vmatpush1.msra.mxu0 %v428
  %455 = vmatprep.subr.mxu0 0.0
  %456 = vmatpush1.msra.mxu0 %v429
  %457 = vmatprep.subr.mxu0 0.0
  %458 = vmatpush1.msra.mxu0 %v430
  %459 = vmatprep.subr.mxu0 0.0
  %460 = vmatpush1.msra.mxu0 %v431
  %461 = vmatprep.subr.mxu0 0.0
  %462 = vmatpush1.msra.mxu0 %v432
  %463 = vmatprep.subr.mxu0 0.0
  %464 = vmatpush1.msra.mxu0 %v433
  %465 = vmatprep.subr.mxu0 0.0
  %466 = vmatpush1.msra.mxu0 %v434
  %467 = vmatprep.subr.mxu0 0.0
  %468 = vmatpush1.msra.mxu0 %v435
  %469 = vmatprep.subr.mxu0 0.0
  %470 = vmatpush1.msra.mxu0 %v436
  %471 = vmatprep.subr.mxu0 0.0
  %472 = vmatpush1.msra.mxu0 %v437
  %473 = vmatprep.subr.mxu0 0.0
  %474 = vmatpush1.msra.mxu0 %v438
  %475 = vmatprep.subr.mxu0 0.0
  %476 = vmatpush1.msra.mxu0 %v439
  %477 = vmatprep.subr.mxu0 0.0
  %478 = vmatpush1.msra.mxu0 %v440
  %479 = vmatprep.subr.mxu0 0.0
  %480 = vmatpush1.msra.mxu0 %v441
  %481 = vmatprep.subr.mxu0 0.0
  %482 = vmatpush1.msra.mxu0 0.0
  %483 = vmatprep.subr.mxu0 0.0
  %484 = vmatpush1.msra.mxu0 0.0
  %485 = vmatprep.subr.mxu0 0.0
  %486 = vmatpush1.msra.mxu0 0.0
  %487 = vmatprep.subr.mxu0 0.0
  %488 = vmatpush1.msra.mxu0 0.0
  %489 = vmatprep.subr.mxu0 0.0
  %490 = vmatpush1.msra.mxu0 0.0
  %491 = vmatprep.subr.mxu0 0.0
  %492 = vmatpush1.msra.mxu0 0.0
  %493 = vmatprep.subr.mxu0 0.0
  %494 = vmatpush1.msra.mxu0 0.0
  %495 = vmatprep.subr.mxu0 0.0
  %496 = vmatpush1.msra.mxu0 0.0
  %497 = vmatprep.subr.mxu0 0.0
  %498 = vmatpush1.msra.mxu0 0.0
  %499 = vmatprep.subr.mxu0 0.0
  %500 = vmatpush1.msra.mxu0 0.0
  %501 = vmatprep.subr.mxu0 0.0
  %502 = vmatpush1.msra.mxu0 0.0
  %503 = vmatprep.subr.mxu0 0.0
  %504 = vmatpush1.msra.mxu0 0.0
  %505 = vmatprep.subr.mxu0 0.0
  %506 = vmatpush1.msra.mxu0 0.0
  %507 = vmatprep.subr.mxu0 0.0
  %508 = vmatpush1.msra.mxu0 0.0
  %509 = vmatprep.subr.mxu0 0.0
  %510 = vmatpush1.msra.mxu0 0.0
  %511 = vmatprep.subr.mxu0 0.0
  %512 = vmatpush1.msra.mxu0 0.0
  %513 = vmatprep.mubr.f32.mxu0 0.0
  %514 = vmatmul.mubr.f32.gmra.mrb[0].mxu0 %v394
  %v515 = vpop.f32.mrb[0].mxu0
  %v516 = vadd.f32 %v447, %v515
  %v517 = vpop.f32.mrb[0].mxu0
  %518 = vmatprep.mubr.f32.mxu0 0.0
  %519 = vmatmul.mubr.f32.gmra.mrb[0].mxu0 %v395
  %v520 = vpop.f32.mrb[0].mxu0
  %v521 = vadd.f32 %v447, %v520
  %v522 = vpop.f32.mrb[0].mxu0
  %523 = vmatprep.mubr.f32.mxu0 0.0
  %524 = vmatmul.mubr.f32.gmra.mrb[0].mxu0 %v396
  %v525 = vpop.f32.mrb[0].mxu0
  %v526 = vadd.f32 %v447, %v525
  %v527 = vpop.f32.mrb[0].mxu0
  %528 = vmatprep.mubr.f32.mxu0 0.0
  %529 = vmatmul.mubr.f32.gmra.mrb[0].mxu0 %v397
  %v530 = vpop.f32.mrb[0].mxu0
  %v531 = vadd.f32 %v447, %v530
  %v532 = vpop.f32.mrb[0].mxu0
  %533 = vmatprep.mubr.f32.mxu0 0.0
  %534 = vmatmul.mubr.f32.gmra.mrb[0].mxu0 %v398
  %v535 = vpop.f32.mrb[0].mxu0
  %v536 = vadd.f32 %v447, %v535
  %v537 = vpop.f32.mrb[0].mxu0
  %538 = vmatprep.mubr.f32.mxu0 0.0
  %539 = vmatmul.mubr.f32.gmra.mrb[0].mxu0 %v399
  %v540 = vpop.f32.mrb[0].mxu0
  %v541 = vadd.f32 %v447, %v540
  %v542 = vpop.f32.mrb[0].mxu0
  %543 = vmatprep.mubr.f32.mxu0 0.0
  %544 = vmatmul.mubr.f32.gmra.mrb[0].mxu0 %v400
  %v545 = vpop.f32.mrb[0].mxu0
  %v546 = vadd.f32 %v447, %v545
  %v547 = vpop.f32.mrb[0].mxu0
  %548 = vmatprep.mubr.f32.mxu0 0.0
  %549 = vmatmul.mubr.f32.gmra.mrb[0].mxu0 %v401
  %v550 = vpop.f32.mrb[0].mxu0
  %v551 = vadd.f32 %v447, %v550
  %v552 = vpop.f32.mrb[0].mxu0
  %553 = vmatprep.mubr.f32.mxu0 0.0
  %554 = vmatmul.mubr.f32.gmra.mrb[0].mxu0 %v402
  %v555 = vpop.f32.mrb[0].mxu0
  %v556 = vadd.f32 %v447, %v555
  %v557 = vpop.f32.mrb[0].mxu0
  %558 = vmatprep.mubr.f32.mxu0 0.0
  %559 = vmatmul.mubr.f32.gmra.mrb[0].mxu0 %v403
  %v560 = vpop.f32.mrb[0].mxu0
  %v561 = vadd.f32 %v447, %v560
  %v562 = vpop.f32.mrb[0].mxu0
  %563 = vmatprep.mubr.f32.mxu0 0.0
  %564 = vmatmul.mubr.f32.gmra.mrb[0].mxu0 %v404
  %v565 = vpop.f32.mrb[0].mxu0
  %v566 = vadd.f32 %v447, %v565
  %v567 = vpop.f32.mrb[0].mxu0
  %568 = vmatprep.mubr.f32.mxu0 0.0
  %569 = vmatmul.mubr.f32.gmra.mrb[0].mxu0 %v405
  %v570 = vpop.f32.mrb[0].mxu0
  %v571 = vadd.f32 %v447, %v570
  %v572 = vpop.f32.mrb[0].mxu0
  %573 = vmatprep.mubr.f32.mxu0 0.0
  %574 = vmatmul.mubr.f32.gmra.mrb[0].mxu0 %v406
  %v575 = vpop.f32.mrb[0].mxu0
  %v576 = vadd.f32 %v447, %v575
  %v577 = vpop.f32.mrb[0].mxu0
  %578 = vmatprep.mubr.f32.mxu0 0.0
  %579 = vmatmul.mubr.f32.gmra.mrb[0].mxu0 %v407
  %v580 = vpop.f32.mrb[0].mxu0
  %v581 = vadd.f32 %v447, %v580
  %v582 = vpop.f32.mrb[0].mxu0
  %583 = vmatprep.mubr.f32.mxu0 0.0
  %584 = vmatmul.mubr.f32.gmra.mrb[0].mxu0 %v408
  %v585 = vpop.f32.mrb[0].mxu0
  %v586 = vadd.f32 %v447, %v585
  %v587 = vpop.f32.mrb[0].mxu0
  %588 = vmatprep.mubr.f32.mxu0 0.0
  %589 = vmatmul.mubr.f32.gmra.mrb[0].mxu0 %v409
  %v590 = vpop.f32.mrb[0].mxu0
  %v591 = vadd.f32 %v447, %v590
  %v592 = vpop.f32.mrb[0].mxu0
  %593 = vmatprep.mubr.f32.mxu0 0.0
  %594 = vmatmul.mubr.f32.gmra.mrb[0].mxu0 %v410
  %v595 = vpop.f32.mrb[0].mxu0
  %v596 = vadd.f32 %v447, %v595
  %v597 = vpop.f32.mrb[0].mxu0
  %598 = vmatprep.mubr.f32.mxu0 0.0
  %599 = vmatmul.mubr.f32.gmra.mrb[0].mxu0 %v411
  %v600 = vpop.f32.mrb[0].mxu0
  %v601 = vadd.f32 %v447, %v600
  %v602 = vpop.f32.mrb[0].mxu0
  %603 = vmatprep.mubr.f32.mxu0 0.0
  %604 = vmatmul.mubr.f32.gmra.mrb[0].mxu0 %v412
  %v605 = vpop.f32.mrb[0].mxu0
  %v606 = vadd.f32 %v447, %v605
  %v607 = vpop.f32.mrb[0].mxu0
  %608 = vmatprep.mubr.f32.mxu0 0.0
  %609 = vmatmul.mubr.f32.gmra.mrb[0].mxu0 %v413
  %v610 = vpop.f32.mrb[0].mxu0
  %v611 = vadd.f32 %v447, %v610
  %v612 = vpop.f32.mrb[0].mxu0
  %613 = vmatprep.mubr.f32.mxu0 0.0
  %614 = vmatmul.mubr.f32.gmra.mrb[0].mxu0 %v414
  %v615 = vpop.f32.mrb[0].mxu0
  %v616 = vadd.f32 %v447, %v615
  %v617 = vpop.f32.mrb[0].mxu0
  %618 = vmatprep.mubr.f32.mxu0 0.0
  %619 = vmatmul.mubr.f32.gmra.mrb[0].mxu0 %v415
  %v620 = vpop.f32.mrb[0].mxu0
  %v621 = vadd.f32 %v447, %v620
  %v622 = vpop.f32.mrb[0].mxu0
  %623 = vmatprep.mubr.f32.mxu0 0.0
  %624 = vmatmul.mubr.f32.gmra.mrb[0].mxu0 %v416
  %v625 = vpop.f32.mrb[0].mxu0
  %v626 = vadd.f32 %v447, %v625
  %v627 = vpop.f32.mrb[0].mxu0
  %628 = vmatprep.mubr.f32.mxu0 0.0
  %629 = vmatmul.mubr.f32.gmra.mrb[0].mxu0 %v417
  %v630 = vpop.f32.mrb[0].mxu0
  %v631 = vadd.f32 %v447, %v630
  %v632 = vpop.f32.mrb[0].mxu0
  %633 = vmatprep.mubr.f32.mxu0 0.0
  %634 = vmatmul.mubr.f32.gmra.mrb[0].mxu0 %v418
  %v635 = vpop.f32.mrb[0].mxu0
  %v636 = vadd.f32 %v447, %v635
  %v637 = vpop.f32.mrb[0].mxu0
  %638 = vmatprep.mubr.f32.mxu0 0.0
  %639 = vmatmul.mubr.f32.gmra.mrb[0].mxu0 %v419
  %v640 = vpop.f32.mrb[0].mxu0
  %v641 = vadd.f32 %v447, %v640
  %v642 = vpop.f32.mrb[0].mxu0
  %643 = vmatprep.mubr.f32.mxu0 0.0
  %644 = vmatmul.mubr.f32.gmra.mrb[0].mxu0 %v420
  %v645 = vpop.f32.mrb[0].mxu0
  %v646 = vadd.f32 %v447, %v645
  %v647 = vpop.f32.mrb[0].mxu0
  %648 = vmatprep.mubr.f32.mxu0 0.0
  %649 = vmatmul.mubr.f32.gmra.mrb[0].mxu0 %v421
  %v650 = vpop.f32.mrb[0].mxu0
  %v651 = vadd.f32 %v447, %v650
  %v652 = vpop.f32.mrb[0].mxu0
  %653 = vmatprep.mubr.f32.mxu0 0.0
  %654 = vmatmul.mubr.f32.gmra.mrb[0].mxu0 %v422
  %v655 = vpop.f32.mrb[0].mxu0
  %v656 = vadd.f32 %v447, %v655
  %v657 = vpop.f32.mrb[0].mxu0
  %658 = vmatprep.mubr.f32.mxu0 0.0
  %659 = vmatmul.mubr.f32.gmra.mrb[0].mxu0 %v423
  %v660 = vpop.f32.mrb[0].mxu0
  %v661 = vadd.f32 %v447, %v660
  %v662 = vpop.f32.mrb[0].mxu0
  %663 = vmatprep.mubr.f32.mxu0 0.0
  %664 = vmatmul.mubr.f32.gmra.mrb[0].mxu0 %v424
  %v665 = vpop.f32.mrb[0].mxu0
  %v666 = vadd.f32 %v447, %v665
  %v667 = vpop.f32.mrb[0].mxu0
  %668 = vmatprep.mubr.f32.mxu0 0.0
  %669 = vmatmul.mubr.f32.gmra.mrb[0].mxu0 %v425
  %v670 = vpop.f32.mrb[0].mxu0
  %v671 = vadd.f32 %v447, %v670
  %v672 = vpop.f32.mrb[0].mxu0
  %673 = vdwg.mxu0
  %v674 = vtanh.pop %v516
  %v675 = vtanh.pop %v521
  %v676 = vtanh.pop %v526
  %v677 = vtanh.pop %v531
  %v678 = vtanh.pop %v536
  %v679 = vtanh.pop %v541
  %v680 = vtanh.pop %v546
  %v681 = vtanh.pop %v551
  %v682 = vtanh.pop %v556
  %v683 = vtanh.pop %v561
  %v684 = vtanh.pop %v566
  %v685 = vtanh.pop %v571
  %v686 = vtanh.pop %v576
  %v687 = vtanh.pop %v581
  %v688 = vtanh.pop %v586
  %v689 = vtanh.pop %v591
  %v690 = vtanh.pop %v596
  %v691 = vtanh.pop %v601
  %v692 = vtanh.pop %v606
  %v693 = vtanh.pop %v611
  %v694 = vtanh.pop %v616
  %v695 = vtanh.pop %v621
  %v696 = vtanh.pop %v626
  %v697 = vtanh.pop %v631
  %v698 = vtanh.pop %v636
  %v699 = vtanh.pop %v641
  %v700 = vtanh.pop %v646
  %v701 = vtanh.pop %v651
  %v702 = vtanh.pop %v656
  %v703 = vtanh.pop %v661
  %v704 = vtanh.pop %v666
  %v705 = vtanh.pop %v671
  %v706 = vld [vmem:[%s5] sm:$0xff]
  %v707 = vld [vmem:[%s5 + $0x8] sm:$0xff]
  %v708 = vld [vmem:[%s5 + $0x10] sm:$0xff]
  %v709 = vld [vmem:[%s5 + $0x18] sm:$0xff]
  %v710 = vld [vmem:[%s5 + $0x20] sm:$0xff]
  %v711 = vld [vmem:[%s5 + $0x28] sm:$0xff]
  %v712 = vld [vmem:[%s5 + $0x30] sm:$0xff]
  %v713 = vld [vmem:[%s5 + $0x38] sm:$0xff]
  %v714 = vld [vmem:[%s5 + $0x40] sm:$0xff]
  %v715 = vld [vmem:[%s5 + $0x48] sm:$0xff]
  %v716 = vld [vmem:[%s5 + $0x50] sm:$0xff]
  %v717 = vld [vmem:[%s5 + $0x58] sm:$0xff]
  %v718 = vld [vmem:[%s5 + $0x60] sm:$0xff]
  %v719 = vld [vmem:[%s5 + $0x68] sm:$0xff]
  %v720 = vld [vmem:[%s5 + $0x70] sm:$0xff]
  %v721 = vld [vmem:[%s5 + $0x78] sm:$0xff]
  %v722 = vld [vmem:[%s6] sm:$0x1]
  %v724 = vlaneseq
  %v725 = vshrl.u32 %v724, 7
  %v726 = vsub.s32 0, %v725
  %v727 = vrot.slane %v722, %v726
  %729 = vmatprep.subr.mxu0 0.0
  %730 = vmatpush1.msra.mxu0 %v706
  %731 = vmatprep.subr.mxu0 0.0
  %732 = vmatpush1.msra.mxu0 %v707
  %733 = vmatprep.subr.mxu0 0.0
  %734 = vmatpush1.msra.mxu0 %v708
  %735 = vmatprep.subr.mxu0 0.0
  %736 = vmatpush1.msra.mxu0 %v709
  %737 = vmatprep.subr.mxu0 0.0
  %738 = vmatpush1.msra.mxu0 %v710
  %739 = vmatprep.subr.mxu0 0.0
  %740 = vmatpush1.msra.mxu0 %v711
  %741 = vmatprep.subr.mxu0 0.0
  %742 = vmatpush1.msra.mxu0 %v712
  %743 = vmatprep.subr.mxu0 0.0
  %744 = vmatpush1.msra.mxu0 %v713
  %745 = vmatprep.subr.mxu0 0.0
  %746 = vmatpush1.msra.mxu0 %v714
  %747 = vmatprep.subr.mxu0 0.0
  %748 = vmatpush1.msra.mxu0 %v715
  %749 = vmatprep.subr.mxu0 0.0
  %750 = vmatpush1.msra.mxu0 %v716
  %751 = vmatprep.subr.mxu0 0.0
  %752 = vmatpush1.msra.mxu0 %v717
  %753 = vmatprep.subr.mxu0 0.0
  %754 = vmatpush1.msra.mxu0 %v718
  %755 = vmatprep.subr.mxu0 0.0
  %756 = vmatpush1.msra.mxu0 %v719
  %757 = vmatprep.subr.mxu0 0.0
  %758 = vmatpush1.msra.mxu0 %v720
  %759 = vmatprep.subr.mxu0 0.0
  %760 = vmatpush1.msra.mxu0 %v721
  %761 = vmatprep.subr.mxu0 0.0
  %762 = vmatpush1.msra.mxu0 0.0
  %763 = vmatprep.subr.mxu0 0.0
  %764 = vmatpush1.msra.mxu0 0.0
  %765 = vmatprep.subr.mxu0 0.0
  %766 = vmatpush1.msra.mxu0 0.0
  %767 = vmatprep.subr.mxu0 0.0
  %768 = vmatpush1.msra.mxu0 0.0
  %769 = vmatprep.subr.mxu0 0.0
  %770 = vmatpush1.msra.mxu0 0.0
  %771 = vmatprep.subr.mxu0 0.0
  %772 = vmatpush1.msra.mxu0 0.0
  %773 = vmatprep.subr.mxu0 0.0
  %774 = vmatpush1.msra.mxu0 0.0
  %775 = vmatprep.subr.mxu0 0.0
  %776 = vmatpush1.msra.mxu0 0.0
  %777 = vmatprep.subr.mxu0 0.0
  %778 = vmatpush1.msra.mxu0 0.0
  %779 = vmatprep.subr.mxu0 0.0
  %780 = vmatpush1.msra.mxu0 0.0
  %781 = vmatprep.subr.mxu0 0.0
  %782 = vmatpush1.msra.mxu0 0.0
  %783 = vmatprep.subr.mxu0 0.0
  %784 = vmatpush1.msra.mxu0 0.0
  %785 = vmatprep.subr.mxu0 0.0
  %786 = vmatpush1.msra.mxu0 0.0
  %787 = vmatprep.subr.mxu0 0.0
  %788 = vmatpush1.msra.mxu0 0.0
  %789 = vmatprep.subr.mxu0 0.0
  %790 = vmatpush1.msra.mxu0 0.0
  %791 = vmatprep.subr.mxu0 0.0
  %792 = vmatpush1.msra.mxu0 0.0
  %793 = vmatprep.mubr.f32.mxu0 0.0
  %794 = vmatmul.mubr.f32.gmra.mrb[0].mxu0 %v674
  %v795 = vpop.f32.mrb[0].mxu0
  %v796 = vadd.f32 %v727, %v795
  %v797 = vpop.f32.mrb[0].mxu0
  %798 = vmatprep.mubr.f32.mxu0 0.0
  %799 = vmatmul.mubr.f32.gmra.mrb[0].mxu0 %v675
  %v800 = vpop.f32.mrb[0].mxu0
  %v801 = vadd.f32 %v727, %v800
  %v802 = vpop.f32.mrb[0].mxu0
  %803 = vmatprep.mubr.f32.mxu0 0.0
  %804 = vmatmul.mubr.f32.gmra.mrb[0].mxu0 %v676
  %v805 = vpop.f32.mrb[0].mxu0
  %v806 = vadd.f32 %v727, %v805
  %v807 = vpop.f32.mrb[0].mxu0
  %808 = vmatprep.mubr.f32.mxu0 0.0
  %809 = vmatmul.mubr.f32.gmra.mrb[0].mxu0 %v677
  %v810 = vpop.f32.mrb[0].mxu0
  %v811 = vadd.f32 %v727, %v810
  %v812 = vpop.f32.mrb[0].mxu0
  %813 = vmatprep.mubr.f32.mxu0 0.0
  %814 = vmatmul.mubr.f32.gmra.mrb[0].mxu0 %v678
  %v815 = vpop.f32.mrb[0].mxu0
  %v816 = vadd.f32 %v727, %v815
  %v817 = vpop.f32.mrb[0].mxu0
  %818 = vmatprep.mubr.f32.mxu0 0.0
  %819 = vmatmul.mubr.f32.gmra.mrb[0].mxu0 %v679
  %v820 = vpop.f32.mrb[0].mxu0
  %v821 = vadd.f32 %v727, %v820
  %v822 = vpop.f32.mrb[0].mxu0
  %823 = vmatprep.mubr.f32.mxu0 0.0
  %824 = vmatmul.mubr.f32.gmra.mrb[0].mxu0 %v680
  %v825 = vpop.f32.mrb[0].mxu0
  %v826 = vadd.f32 %v727, %v825
  %v827 = vpop.f32.mrb[0].mxu0
  %828 = vmatprep.mubr.f32.mxu0 0.0
  %829 = vmatmul.mubr.f32.gmra.mrb[0].mxu0 %v681
  %v830 = vpop.f32.mrb[0].mxu0
  %v831 = vadd.f32 %v727, %v830
  %v832 = vpop.f32.mrb[0].mxu0
  %833 = vmatprep.mubr.f32.mxu0 0.0
  %834 = vmatmul.mubr.f32.gmra.mrb[0].mxu0 %v682
  %v835 = vpop.f32.mrb[0].mxu0
  %v836 = vadd.f32 %v727, %v835
  %v837 = vpop.f32.mrb[0].mxu0
  %838 = vmatprep.mubr.f32.mxu0 0.0
  %839 = vmatmul.mubr.f32.gmra.mrb[0].mxu0 %v683
  %v840 = vpop.f32.mrb[0].mxu0
  %v841 = vadd.f32 %v727, %v840
  %v842 = vpop.f32.mrb[0].mxu0
  %843 = vmatprep.mubr.f32.mxu0 0.0
  %844 = vmatmul.mubr.f32.gmra.mrb[0].mxu0 %v684
  %v845 = vpop.f32.mrb[0].mxu0
  %v846 = vadd.f32 %v727, %v845
  %v847 = vpop.f32.mrb[0].mxu0
  %848 = vmatprep.mubr.f32.mxu0 0.0
  %849 = vmatmul.mubr.f32.gmra.mrb[0].mxu0 %v685
  %v850 = vpop.f32.mrb[0].mxu0
  %v851 = vadd.f32 %v727, %v850
  %v852 = vpop.f32.mrb[0].mxu0
  %853 = vmatprep.mubr.f32.mxu0 0.0
  %854 = vmatmul.mubr.f32.gmra.mrb[0].mxu0 %v686
  %v855 = vpop.f32.mrb[0].mxu0
  %v856 = vadd.f32 %v727, %v855
  %v857 = vpop.f32.mrb[0].mxu0
  %858 = vmatprep.mubr.f32.mxu0 0.0
  %859 = vmatmul.mubr.f32.gmra.mrb[0].mxu0 %v687
  %v860 = vpop.f32.mrb[0].mxu0
  %v861 = vadd.f32 %v727, %v860
  %v862 = vpop.f32.mrb[0].mxu0
  %863 = vmatprep.mubr.f32.mxu0 0.0
  %864 = vmatmul.mubr.f32.gmra.mrb[0].mxu0 %v688
  %v865 = vpop.f32.mrb[0].mxu0
  %v866 = vadd.f32 %v727, %v865
  %v867 = vpop.f32.mrb[0].mxu0
  %868 = vmatprep.mubr.f32.mxu0 0.0
  %869 = vmatmul.mubr.f32.gmra.mrb[0].mxu0 %v689
  %v870 = vpop.f32.mrb[0].mxu0
  %v871 = vadd.f32 %v727, %v870
  %v872 = vpop.f32.mrb[0].mxu0
  %873 = vmatprep.mubr.f32.mxu0 0.0
  %874 = vmatmul.mubr.f32.gmra.mrb[0].mxu0 %v690
  %v875 = vpop.f32.mrb[0].mxu0
  %v876 = vadd.f32 %v727, %v875
  %v877 = vpop.f32.mrb[0].mxu0
  %878 = vmatprep.mubr.f32.mxu0 0.0
  %879 = vmatmul.mubr.f32.gmra.mrb[0].mxu0 %v691
  %v880 = vpop.f32.mrb[0].mxu0
  %v881 = vadd.f32 %v727, %v880
  %v882 = vpop.f32.mrb[0].mxu0
  %883 = vmatprep.mubr.f32.mxu0 0.0
  %884 = vmatmul.mubr.f32.gmra.mrb[0].mxu0 %v692
  %v885 = vpop.f32.mrb[0].mxu0
  %v886 = vadd.f32 %v727, %v885
  %v887 = vpop.f32.mrb[0].mxu0
  %888 = vmatprep.mubr.f32.mxu0 0.0
  %889 = vmatmul.mubr.f32.gmra.mrb[0].mxu0 %v693
  %v890 = vpop.f32.mrb[0].mxu0
  %v891 = vadd.f32 %v727, %v890
  %v892 = vpop.f32.mrb[0].mxu0
  %893 = vmatprep.mubr.f32.mxu0 0.0
  %894 = vmatmul.mubr.f32.gmra.mrb[0].mxu0 %v694
  %v895 = vpop.f32.mrb[0].mxu0
  %v896 = vadd.f32 %v727, %v895
  %v897 = vpop.f32.mrb[0].mxu0
  %898 = vmatprep.mubr.f32.mxu0 0.0
  %899 = vmatmul.mubr.f32.gmra.mrb[0].mxu0 %v695
  %v900 = vpop.f32.mrb[0].mxu0
  %v901 = vadd.f32 %v727, %v900
  %v902 = vpop.f32.mrb[0].mxu0
  %903 = vmatprep.mubr.f32.mxu0 0.0
  %904 = vmatmul.mubr.f32.gmra.mrb[0].mxu0 %v696
  %v905 = vpop.f32.mrb[0].mxu0
  %v906 = vadd.f32 %v727, %v905
  %v907 = vpop.f32.mrb[0].mxu0
  %908 = vmatprep.mubr.f32.mxu0 0.0
  %909 = vmatmul.mubr.f32.gmra.mrb[0].mxu0 %v697
  %v910 = vpop.f32.mrb[0].mxu0
  %v911 = vadd.f32 %v727, %v910
  %v912 = vpop.f32.mrb[0].mxu0
  %913 = vmatprep.mubr.f32.mxu0 0.0
  %914 = vmatmul.mubr.f32.gmra.mrb[0].mxu0 %v698
  %v915 = vpop.f32.mrb[0].mxu0
  %v916 = vadd.f32 %v727, %v915
  %v917 = vpop.f32.mrb[0].mxu0
  %918 = vmatprep.mubr.f32.mxu0 0.0
  %919 = vmatmul.mubr.f32.gmra.mrb[0].mxu0 %v699
  %v920 = vpop.f32.mrb[0].mxu0
  %v921 = vadd.f32 %v727, %v920
  %v922 = vpop.f32.mrb[0].mxu0
  %923 = vmatprep.mubr.f32.mxu0 0.0
  %924 = vmatmul.mubr.f32.gmra.mrb[0].mxu0 %v700
  %v925 = vpop.f32.mrb[0].mxu0
  %v926 = vadd.f32 %v727, %v925
  %v927 = vpop.f32.mrb[0].mxu0
  %928 = vmatprep.mubr.f32.mxu0 0.0
  %929 = vmatmul.mubr.f32.gmra.mrb[0].mxu0 %v701
  %v930 = vpop.f32.mrb[0].mxu0
  %v931 = vadd.f32 %v727, %v930
  %v932 = vpop.f32.mrb[0].mxu0
  %933 = vmatprep.mubr.f32.mxu0 0.0
  %934 = vmatmul.mubr.f32.gmra.mrb[0].mxu0 %v702
  %v935 = vpop.f32.mrb[0].mxu0
  %v936 = vadd.f32 %v727, %v935
  %v937 = vpop.f32.mrb[0].mxu0
  %938 = vmatprep.mubr.f32.mxu0 0.0
  %939 = vmatmul.mubr.f32.gmra.mrb[0].mxu0 %v703
  %v940 = vpop.f32.mrb[0].mxu0
  %v941 = vadd.f32 %v727, %v940
  %v942 = vpop.f32.mrb[0].mxu0
  %943 = vmatprep.mubr.f32.mxu0 0.0
  %944 = vmatmul.mubr.f32.gmra.mrb[0].mxu0 %v704
  %v945 = vpop.f32.mrb[0].mxu0
  %v946 = vadd.f32 %v727, %v945
  %v947 = vpop.f32.mrb[0].mxu0
  %948 = vmatprep.mubr.f32.mxu0 0.0
  %949 = vmatmul.mubr.f32.gmra.mrb[0].mxu0 %v705
  %v950 = vpop.f32.mrb[0].mxu0
  %v951 = vadd.f32 %v727, %v950
  %v952 = vpop.f32.mrb[0].mxu0
  %953 = vdwg.mxu0
  %v954 = vtanh.pop %v796
  %v955 = vtanh.pop %v801
  %v956 = vtanh.pop %v806
  %v957 = vtanh.pop %v811
  %v958 = vtanh.pop %v816
  %v959 = vtanh.pop %v821
  %v960 = vtanh.pop %v826
  %v961 = vtanh.pop %v831
  %v962 = vtanh.pop %v836
  %v963 = vtanh.pop %v841
  %v964 = vtanh.pop %v846
  %v965 = vtanh.pop %v851
  %v966 = vtanh.pop %v856
  %v967 = vtanh.pop %v861
  %v968 = vtanh.pop %v866
  %v969 = vtanh.pop %v871
  %v970 = vtanh.pop %v876
  %v971 = vtanh.pop %v881
  %v972 = vtanh.pop %v886
  %v973 = vtanh.pop %v891
  %v974 = vtanh.pop %v896
  %v975 = vtanh.pop %v901
  %v976 = vtanh.pop %v906
  %v977 = vtanh.pop %v911
  %v978 = vtanh.pop %v916
  %v979 = vtanh.pop %v921
  %v980 = vtanh.pop %v926
  %v981 = vtanh.pop %v931
  %v982 = vtanh.pop %v936
  %v983 = vtanh.pop %v941
  %v984 = vtanh.pop %v946
  %v985 = vtanh.pop %v951
  %v986 = vld [vmem:[%s7] sm:$0xff]
  %v987 = vld [vmem:[%s7 + $0x8] sm:$0xff]
  %v988 = vld [vmem:[%s7 + $0x10] sm:$0xff]
  %v989 = vld [vmem:[%s7 + $0x18] sm:$0xff]
  %v990 = vld [vmem:[%s7 + $0x20] sm:$0xff]
  %v991 = vld [vmem:[%s7 + $0x28] sm:$0xff]
  %v992 = vld [vmem:[%s7 + $0x30] sm:$0xff]
  %v993 = vld [vmem:[%s7 + $0x38] sm:$0xff]
  %v994 = vld [vmem:[%s7 + $0x40] sm:$0xff]
  %v995 = vld [vmem:[%s7 + $0x48] sm:$0xff]
  %v996 = vld [vmem:[%s7 + $0x50] sm:$0xff]
  %v997 = vld [vmem:[%s7 + $0x58] sm:$0xff]
  %v998 = vld [vmem:[%s7 + $0x60] sm:$0xff]
  %v999 = vld [vmem:[%s7 + $0x68] sm:$0xff]
  %v1000 = vld [vmem:[%s7 + $0x70] sm:$0xff]
  %v1001 = vld [vmem:[%s7 + $0x78] sm:$0xff]
  %v1002 = vld [vmem:[%s8] sm:$0x1]
  %v1004 = vlaneseq
  %v1005 = vshrl.u32 %v1004, 7
  %v1006 = vsub.s32 0, %v1005
  %v1007 = vrot.slane %v1002, %v1006
  %1009 = vmatprep.subr.mxu0 0.0
  %1010 = vmatpush1.msra.mxu0 %v986
  %1011 = vmatprep.subr.mxu0 0.0
  %1012 = vmatpush1.msra.mxu0 %v987
  %1013 = vmatprep.subr.mxu0 0.0
  %1014 = vmatpush1.msra.mxu0 %v988
  %1015 = vmatprep.subr.mxu0 0.0
  %1016 = vmatpush1.msra.mxu0 %v989
  %1017 = vmatprep.subr.mxu0 0.0
  %1018 = vmatpush1.msra.mxu0 %v990
  %1019 = vmatprep.subr.mxu0 0.0
  %1020 = vmatpush1.msra.mxu0 %v991
  %1021 = vmatprep.subr.mxu0 0.0
  %1022 = vmatpush1.msra.mxu0 %v992
  %1023 = vmatprep.subr.mxu0 0.0
  %1024 = vmatpush1.msra.mxu0 %v993
  %1025 = vmatprep.subr.mxu0 0.0
  %1026 = vmatpush1.msra.mxu0 %v994
  %1027 = vmatprep.subr.mxu0 0.0
  %1028 = vmatpush1.msra.mxu0 %v995
  %1029 = vmatprep.subr.mxu0 0.0
  %1030 = vmatpush1.msra.mxu0 %v996
  %1031 = vmatprep.subr.mxu0 0.0
  %1032 = vmatpush1.msra.mxu0 %v997
  %1033 = vmatprep.subr.mxu0 0.0
  %1034 = vmatpush1.msra.mxu0 %v998
  %1035 = vmatprep.subr.mxu0 0.0
  %1036 = vmatpush1.msra.mxu0 %v999
  %1037 = vmatprep.subr.mxu0 0.0
  %1038 = vmatpush1.msra.mxu0 %v1000
  %1039 = vmatprep.subr.mxu0 0.0
  %1040 = vmatpush1.msra.mxu0 %v1001
  %1041 = vmatprep.subr.mxu0 0.0
  %1042 = vmatpush1.msra.mxu0 0.0
  %1043 = vmatprep.subr.mxu0 0.0
  %1044 = vmatpush1.msra.mxu0 0.0
  %1045 = vmatprep.subr.mxu0 0.0
  %1046 = vmatpush1.msra.mxu0 0.0
  %1047 = vmatprep.subr.mxu0 0.0
  %1048 = vmatpush1.msra.mxu0 0.0
  %1049 = vmatprep.subr.mxu0 0.0
  %1050 = vmatpush1.msra.mxu0 0.0
  %1051 = vmatprep.subr.mxu0 0.0
  %1052 = vmatpush1.msra.mxu0 0.0
  %1053 = vmatprep.subr.mxu0 0.0
  %1054 = vmatpush1.msra.mxu0 0.0
  %1055 = vmatprep.subr.mxu0 0.0
  %1056 = vmatpush1.msra.mxu0 0.0
  %1057 = vmatprep.subr.mxu0 0.0
  %1058 = vmatpush1.msra.mxu0 0.0
  %1059 = vmatprep.subr.mxu0 0.0
  %1060 = vmatpush1.msra.mxu0 0.0
  %1061 = vmatprep.subr.mxu0 0.0
  %1062 = vmatpush1.msra.mxu0 0.0
  %1063 = vmatprep.subr.mxu0 0.0
  %1064 = vmatpush1.msra.mxu0 0.0
  %1065 = vmatprep.subr.mxu0 0.0
  %1066 = vmatpush1.msra.mxu0 0.0
  %1067 = vmatprep.subr.mxu0 0.0
  %1068 = vmatpush1.msra.mxu0 0.0
  %1069 = vmatprep.subr.mxu0 0.0
  %1070 = vmatpush1.msra.mxu0 0.0
  %1071 = vmatprep.subr.mxu0 0.0
  %1072 = vmatpush1.msra.mxu0 0.0
  %1073 = vmatprep.mubr.f32.mxu0 0.0
  %1074 = vmatmul.mubr.f32.gmra.mrb[0].mxu0 %v954
  %v1075 = vpop.f32.mrb[0].mxu0
  %v1076 = vadd.f32 %v1007, %v1075
  %v1077 = vpop.f32.mrb[0].mxu0
  %1078 = vmatprep.mubr.f32.mxu0 0.0
  %1079 = vmatmul.mubr.f32.gmra.mrb[0].mxu0 %v955
  %v1080 = vpop.f32.mrb[0].mxu0
  %v1081 = vadd.f32 %v1007, %v1080
  %v1082 = vpop.f32.mrb[0].mxu0
  %1083 = vmatprep.mubr.f32.mxu0 0.0
  %1084 = vmatmul.mubr.f32.gmra.mrb[0].mxu0 %v956
  %v1085 = vpop.f32.mrb[0].mxu0
  %v1086 = vadd.f32 %v1007, %v1085
  %v1087 = vpop.f32.mrb[0].mxu0
  %1088 = vmatprep.mubr.f32.mxu0 0.0
  %1089 = vmatmul.mubr.f32.gmra.mrb[0].mxu0 %v957
  %v1090 = vpop.f32.mrb[0].mxu0
  %v1091 = vadd.f32 %v1007, %v1090
  %v1092 = vpop.f32.mrb[0].mxu0
  %1093 = vmatprep.mubr.f32.mxu0 0.0
  %1094 = vmatmul.mubr.f32.gmra.mrb[0].mxu0 %v958
  %v1095 = vpop.f32.mrb[0].mxu0
  %v1096 = vadd.f32 %v1007, %v1095
  %v1097 = vpop.f32.mrb[0].mxu0
  %1098 = vmatprep.mubr.f32.mxu0 0.0
  %1099 = vmatmul.mubr.f32.gmra.mrb[0].mxu0 %v959
  %v1100 = vpop.f32.mrb[0].mxu0
  %v1101 = vadd.f32 %v1007, %v1100
  %v1102 = vpop.f32.mrb[0].mxu0
  %1103 = vmatprep.mubr.f32.mxu0 0.0
  %1104 = vmatmul.mubr.f32.gmra.mrb[0].mxu0 %v960
  %v1105 = vpop.f32.mrb[0].mxu0
  %v1106 = vadd.f32 %v1007, %v1105
  %v1107 = vpop.f32.mrb[0].mxu0
  %1108 = vmatprep.mubr.f32.mxu0 0.0
  %1109 = vmatmul.mubr.f32.gmra.mrb[0].mxu0 %v961
  %v1110 = vpop.f32.mrb[0].mxu0
  %v1111 = vadd.f32 %v1007, %v1110
  %v1112 = vpop.f32.mrb[0].mxu0
  %1113 = vmatprep.mubr.f32.mxu0 0.0
  %1114 = vmatmul.mubr.f32.gmra.mrb[0].mxu0 %v962
  %v1115 = vpop.f32.mrb[0].mxu0
  %v1116 = vadd.f32 %v1007, %v1115
  %v1117 = vpop.f32.mrb[0].mxu0
  %1118 = vmatprep.mubr.f32.mxu0 0.0
  %1119 = vmatmul.mubr.f32.gmra.mrb[0].mxu0 %v963
  %v1120 = vpop.f32.mrb[0].mxu0
  %v1121 = vadd.f32 %v1007, %v1120
  %v1122 = vpop.f32.mrb[0].mxu0
  %1123 = vmatprep.mubr.f32.mxu0 0.0
  %1124 = vmatmul.mubr.f32.gmra.mrb[0].mxu0 %v964
  %v1125 = vpop.f32.mrb[0].mxu0
  %v1126 = vadd.f32 %v1007, %v1125
  %v1127 = vpop.f32.mrb[0].mxu0
  %1128 = vmatprep.mubr.f32.mxu0 0.0
  %1129 = vmatmul.mubr.f32.gmra.mrb[0].mxu0 %v965
  %v1130 = vpop.f32.mrb[0].mxu0
  %v1131 = vadd.f32 %v1007, %v1130
  %v1132 = vpop.f32.mrb[0].mxu0
  %1133 = vmatprep.mubr.f32.mxu0 0.0
  %1134 = vmatmul.mubr.f32.gmra.mrb[0].mxu0 %v966
  %v1135 = vpop.f32.mrb[0].mxu0
  %v1136 = vadd.f32 %v1007, %v1135
  %v1137 = vpop.f32.mrb[0].mxu0
  %1138 = vmatprep.mubr.f32.mxu0 0.0
  %1139 = vmatmul.mubr.f32.gmra.mrb[0].mxu0 %v967
  %v1140 = vpop.f32.mrb[0].mxu0
  %v1141 = vadd.f32 %v1007, %v1140
  %v1142 = vpop.f32.mrb[0].mxu0
  %1143 = vmatprep.mubr.f32.mxu0 0.0
  %1144 = vmatmul.mubr.f32.gmra.mrb[0].mxu0 %v968
  %v1145 = vpop.f32.mrb[0].mxu0
  %v1146 = vadd.f32 %v1007, %v1145
  %v1147 = vpop.f32.mrb[0].mxu0
  %1148 = vmatprep.mubr.f32.mxu0 0.0
  %1149 = vmatmul.mubr.f32.gmra.mrb[0].mxu0 %v969
  %v1150 = vpop.f32.mrb[0].mxu0
  %v1151 = vadd.f32 %v1007, %v1150
  %v1152 = vpop.f32.mrb[0].mxu0
  %1153 = vmatprep.mubr.f32.mxu0 0.0
  %1154 = vmatmul.mubr.f32.gmra.mrb[0].mxu0 %v970
  %v1155 = vpop.f32.mrb[0].mxu0
  %v1156 = vadd.f32 %v1007, %v1155
  %v1157 = vpop.f32.mrb[0].mxu0
  %1158 = vmatprep.mubr.f32.mxu0 0.0
  %1159 = vmatmul.mubr.f32.gmra.mrb[0].mxu0 %v971
  %v1160 = vpop.f32.mrb[0].mxu0
  %v1161 = vadd.f32 %v1007, %v1160
  %v1162 = vpop.f32.mrb[0].mxu0
  %1163 = vmatprep.mubr.f32.mxu0 0.0
  %1164 = vmatmul.mubr.f32.gmra.mrb[0].mxu0 %v972
  %v1165 = vpop.f32.mrb[0].mxu0
  %v1166 = vadd.f32 %v1007, %v1165
  %v1167 = vpop.f32.mrb[0].mxu0
  %1168 = vmatprep.mubr.f32.mxu0 0.0
  %1169 = vmatmul.mubr.f32.gmra.mrb[0].mxu0 %v973
  %v1170 = vpop.f32.mrb[0].mxu0
  %v1171 = vadd.f32 %v1007, %v1170
  %v1172 = vpop.f32.mrb[0].mxu0
  %1173 = vmatprep.mubr.f32.mxu0 0.0
  %1174 = vmatmul.mubr.f32.gmra.mrb[0].mxu0 %v974
  %v1175 = vpop.f32.mrb[0].mxu0
  %v1176 = vadd.f32 %v1007, %v1175
  %v1177 = vpop.f32.mrb[0].mxu0
  %1178 = vmatprep.mubr.f32.mxu0 0.0
  %1179 = vmatmul.mubr.f32.gmra.mrb[0].mxu0 %v975
  %v1180 = vpop.f32.mrb[0].mxu0
  %v1181 = vadd.f32 %v1007, %v1180
  %v1182 = vpop.f32.mrb[0].mxu0
  %1183 = vmatprep.mubr.f32.mxu0 0.0
  %1184 = vmatmul.mubr.f32.gmra.mrb[0].mxu0 %v976
  %v1185 = vpop.f32.mrb[0].mxu0
  %v1186 = vadd.f32 %v1007, %v1185
  %v1187 = vpop.f32.mrb[0].mxu0
  %1188 = vmatprep.mubr.f32.mxu0 0.0
  %1189 = vmatmul.mubr.f32.gmra.mrb[0].mxu0 %v977
  %v1190 = vpop.f32.mrb[0].mxu0
  %v1191 = vadd.f32 %v1007, %v1190
  %v1192 = vpop.f32.mrb[0].mxu0
  %1193 = vmatprep.mubr.f32.mxu0 0.0
  %1194 = vmatmul.mubr.f32.gmra.mrb[0].mxu0 %v978
  %v1195 = vpop.f32.mrb[0].mxu0
  %v1196 = vadd.f32 %v1007, %v1195
  %v1197 = vpop.f32.mrb[0].mxu0
  %1198 = vmatprep.mubr.f32.mxu0 0.0
  %1199 = vmatmul.mubr.f32.gmra.mrb[0].mxu0 %v979
  %v1200 = vpop.f32.mrb[0].mxu0
  %v1201 = vadd.f32 %v1007, %v1200
  %v1202 = vpop.f32.mrb[0].mxu0
  %1203 = vmatprep.mubr.f32.mxu0 0.0
  %1204 = vmatmul.mubr.f32.gmra.mrb[0].mxu0 %v980
  %v1205 = vpop.f32.mrb[0].mxu0
  %v1206 = vadd.f32 %v1007, %v1205
  %v1207 = vpop.f32.mrb[0].mxu0
  %1208 = vmatprep.mubr.f32.mxu0 0.0
  %1209 = vmatmul.mubr.f32.gmra.mrb[0].mxu0 %v981
  %v1210 = vpop.f32.mrb[0].mxu0
  %v1211 = vadd.f32 %v1007, %v1210
  %v1212 = vpop.f32.mrb[0].mxu0
  %1213 = vmatprep.mubr.f32.mxu0 0.0
  %1214 = vmatmul.mubr.f32.gmra.mrb[0].mxu0 %v982
  %v1215 = vpop.f32.mrb[0].mxu0
  %v1216 = vadd.f32 %v1007, %v1215
  %v1217 = vpop.f32.mrb[0].mxu0
  %1218 = vmatprep.mubr.f32.mxu0 0.0
  %1219 = vmatmul.mubr.f32.gmra.mrb[0].mxu0 %v983
  %v1220 = vpop.f32.mrb[0].mxu0
  %v1221 = vadd.f32 %v1007, %v1220
  %v1222 = vpop.f32.mrb[0].mxu0
  %1223 = vmatprep.mubr.f32.mxu0 0.0
  %1224 = vmatmul.mubr.f32.gmra.mrb[0].mxu0 %v984
  %v1225 = vpop.f32.mrb[0].mxu0
  %v1226 = vadd.f32 %v1007, %v1225
  %v1227 = vpop.f32.mrb[0].mxu0
  %1228 = vmatprep.mubr.f32.mxu0 0.0
  %1229 = vmatmul.mubr.f32.gmra.mrb[0].mxu0 %v985
  %v1230 = vpop.f32.mrb[0].mxu0
  %v1231 = vadd.f32 %v1007, %v1230
  %v1232 = vpop.f32.mrb[0].mxu0
  %1233 = vdwg.mxu0
  %vm1234 = vcmask 97280
  %1235 = vst.msk [vmem:[%s9] sm:$0xff] %vm1234, %v1076
  %1236 = vst.msk [vmem:[%s9 + $0x8] sm:$0xff] %vm1234, %v1081
  %1237 = vst.msk [vmem:[%s9 + $0x10] sm:$0xff] %vm1234, %v1086
  %1238 = vst.msk [vmem:[%s9 + $0x18] sm:$0xff] %vm1234, %v1091
  %1239 = vst.msk [vmem:[%s9 + $0x20] sm:$0xff] %vm1234, %v1096
  %1240 = vst.msk [vmem:[%s9 + $0x28] sm:$0xff] %vm1234, %v1101
  %1241 = vst.msk [vmem:[%s9 + $0x30] sm:$0xff] %vm1234, %v1106
  %1242 = vst.msk [vmem:[%s9 + $0x38] sm:$0xff] %vm1234, %v1111
  %1243 = vst.msk [vmem:[%s9 + $0x40] sm:$0xff] %vm1234, %v1116
  %1244 = vst.msk [vmem:[%s9 + $0x48] sm:$0xff] %vm1234, %v1121
  %1245 = vst.msk [vmem:[%s9 + $0x50] sm:$0xff] %vm1234, %v1126
  %1246 = vst.msk [vmem:[%s9 + $0x58] sm:$0xff] %vm1234, %v1131
  %1247 = vst.msk [vmem:[%s9 + $0x60] sm:$0xff] %vm1234, %v1136
  %1248 = vst.msk [vmem:[%s9 + $0x68] sm:$0xff] %vm1234, %v1141
  %1249 = vst.msk [vmem:[%s9 + $0x70] sm:$0xff] %vm1234, %v1146
  %1250 = vst.msk [vmem:[%s9 + $0x78] sm:$0xff] %vm1234, %v1151
  %1251 = vst.msk [vmem:[%s9 + $0x80] sm:$0xff] %vm1234, %v1156
  %1252 = vst.msk [vmem:[%s9 + $0x88] sm:$0xff] %vm1234, %v1161
  %1253 = vst.msk [vmem:[%s9 + $0x90] sm:$0xff] %vm1234, %v1166
  %1254 = vst.msk [vmem:[%s9 + $0x98] sm:$0xff] %vm1234, %v1171
  %1255 = vst.msk [vmem:[%s9 + $0xa0] sm:$0xff] %vm1234, %v1176
  %1256 = vst.msk [vmem:[%s9 + $0xa8] sm:$0xff] %vm1234, %v1181
  %1257 = vst.msk [vmem:[%s9 + $0xb0] sm:$0xff] %vm1234, %v1186
  %1258 = vst.msk [vmem:[%s9 + $0xb8] sm:$0xff] %vm1234, %v1191
  %1259 = vst.msk [vmem:[%s9 + $0xc0] sm:$0xff] %vm1234, %v1196
  %1260 = vst.msk [vmem:[%s9 + $0xc8] sm:$0xff] %vm1234, %v1201
  %1261 = vst.msk [vmem:[%s9 + $0xd0] sm:$0xff] %vm1234, %v1206
  %1262 = vst.msk [vmem:[%s9 + $0xd8] sm:$0xff] %vm1234, %v1211
  %1263 = vst.msk [vmem:[%s9 + $0xe0] sm:$0xff] %vm1234, %v1216
  %1264 = vst.msk [vmem:[%s9 + $0xe8] sm:$0xff] %vm1234, %v1221
  %1265 = vst.msk [vmem:[%s9 + $0xf0] sm:$0xff] %vm1234, %v1226
  %1266 = vst.msk [vmem:[%s9 + $0xf8] sm:$0xff] %vm1234, %v1231
  // Predicated region
  $region38: #{dnn_forward.1} parent=0 // pred_check
    _
  $region39: #{dnn_forward.1} parent=0 // pred_check_branch
    %1268 = sbr.rel (0) target = $region41
  $region40: #{dnn_forward.1} parent=0 // pred_region
    _
  $region41: #{dnn_forward.1} parent=0 // pred_fallthru
    _
  // Predicated region
  $region42: #{dnn_forward.1} parent=0 // pred_check
    _
  $region43: #{dnn_forward.1} parent=0 // pred_check_branch
    %1270 = sbr.rel (0) target = $region45
  $region44: #{dnn_forward.1} parent=0 // pred_region
    _
  $region45: #{dnn_forward.1} parent=0 // pred_fallthru
    _

</llo_original>
